<compile_context>
chip_gen: v7x
topology: tpu7x:2x2x1
jax: 0.10.0
libtpu: 0.0.40
codegen_flags: <defaults>
</compile_context>

<pallas_src>
import functools
import math

import jax
import jax.numpy as jnp
from jax.experimental import pallas as pl
from jax.experimental.pallas import tpu as pltpu

HIDDEN_SIZE = 4096
LATENT_SIZE = 512

# Static architecture (never traced): (cin, cout, kernel, stride)
ENC_CONV_CFG = ((1, 32, 4, 2), (32, 64, 4, 2), (64, 128, 4, 2), (128, 256, 4, 2))
DEC_CONVT_CFG = ((256, 128, 4, 2), (128, 64, 4, 2), (64, 32, 4, 2), (32, 1, 6, 2))
DEC_ACTS = ("relu", "relu", "relu", "sigmoid")


# ------------------------ per-generation tiling config -----------------------


@functools.lru_cache(maxsize=1)
def _tpu_cfg():
    kind = ""
    try:
        kind = jax.devices()[0].device_kind.lower()
    except Exception:
        pass
    if ("v5" in kind) or ("v6" in kind):
        # 128 MiB physical VMEM, single TensorCore: afford bigger FC tiles
        # (saves a few pipeline steps; layers are weight-DMA bound anyway).
        return {"tm_cap": 1024, "tn_cap": 4096, "tk_cap": 2304,
                "vmem_limit": 80 * 1024 * 1024}
    # v7x-safe defaults: 64 MiB physical VMEM; keep >=2 N blocks per big FC
    # layer so both TensorCores (megacore) stream the weight in parallel.
    return {"tm_cap": 1024, "tn_cap": 2048, "tk_cap": 2304,
            "vmem_limit": 48 * 1024 * 1024}


# ----------------------------- Pallas kernels ------------------------------


def _apply_act(y, act):
    if act == "leaky_relu":
        return jnp.where(y >= 0, y, 0.2 * y)   # LeakyReLU(0.2) as in the spec
    if act == "relu":
        return jnp.maximum(y, 0.0)
    if act == "sigmoid":
        return jax.nn.sigmoid(y)
    return y


def _matmul_bias_act_kernel(x_ref, w_ref, b_ref, o_ref, acc_ref, *, act):
    """Tiled matmul with K-reduction accumulator, fused bias + activation."""
    @pl.when(pl.program_id(2) == 0)
    def _():
        acc_ref[...] = jnp.zeros_like(acc_ref)

    acc_ref[...] += jnp.dot(
        x_ref[...], w_ref[...], preferred_element_type=jnp.float32
    )

    @pl.when(pl.program_id(2) == pl.num_programs(2) - 1)
    def _():
        y = _apply_act(acc_ref[...] + b_ref[...], act)
        o_ref[...] = y.astype(o_ref.dtype)


def _matmul_bias_act_1k_kernel(x_ref, w_ref, b_ref, o_ref, *, act):
    """Single-K-step variant: no accumulator scratch, no init/finalize."""
    y = jnp.dot(x_ref[...], w_ref[...], preferred_element_type=jnp.float32)
    y = _apply_act(y + b_ref[...], act)
    o_ref[...] = y.astype(o_ref.dtype)


def _reparam_kernel(lm_ref, eps_ref, z_ref, *, L):
    """z = eps * exp(0.5 * log_var) + mean, with lm = [log_var | mean]."""
    lm = lm_ref[...]
    z = eps_ref[...] * jnp.exp(0.5 * lm[:, :L]) + lm[:, L:]
    z_ref[...] = z.astype(z_ref.dtype)


# --------------------------- tiling / wrappers ------------------------------


def _round_up(x, m):
    return ((x + m - 1) // m) * m


def _pick_tile(dim, cap, align):
    """Tile size for one dim: the full (aligned) dim if it fits, else the
    largest multiple of `align` that divides the aligned dim (no padding),
    else near-equal aligned chunks (minimal padding, never the raw cap)."""
    d = _round_up(dim, align)
    if d <= cap:
        return d
    best = 0
    t = align
    while t <= cap:
        if d % t == 0:
            best = t
        t += align
    if best >= cap // 2:
        return best
    nchunks = -(-d // cap)
    return _round_up(-(-d // nchunks), align)


def matmul_bias_act(x, w, b, act="none", out_dtype=jnp.bfloat16,
                    tm_cap=None, tn_cap=None, tk_cap=None):
    """y = act(x @ w + b) on the MXU (bf16 inputs, f32 accumulate).

    x: (M, K), w: (K, N) [pre-transposed / pre-flattened], b: (1, N) f32.
    Only M is ever padded for this model; K/N use full-dim or exact-divisor
    tiles (small K/N stay unpadded full-dim blocks -> narrow masked stores).
    """
    cfg = _tpu_cfg()
    tm_cap = tm_cap or cfg["tm_cap"]
    tn_cap = tn_cap or cfg["tn_cap"]
    tk_cap = tk_cap or cfg["tk_cap"]

    M, K = x.shape
    K2, N = w.shape
    assert K == K2, (K, K2)
    assert b.shape == (1, N), (b.shape, N)

    if K <= tk_cap:
        tk, Kp = K, K                 # full-dim block: exempt from (8,128)
    else:
        tk = _pick_tile(K, tk_cap, 128)
        Kp = _round_up(K, tk)
    if N <= tn_cap:
        tn, Np = N, N                 # full-dim block: exempt from (8,128)
    else:
        tn = _pick_tile(N, tn_cap, 128)
        Np = _round_up(N, tn)
    tm = _pick_tile(M, tm_cap, 8)
    Mp = _round_up(M, tm)

    xp = x if x.dtype == jnp.bfloat16 else x.astype(jnp.bfloat16)
    if (Mp, Kp) != (M, K):
        xp = jnp.pad(xp, ((0, Mp - M), (0, Kp - K)))
    wp = w if w.dtype == jnp.bfloat16 else w.astype(jnp.bfloat16)
    if (Kp, Np) != (K, N):            # never triggers for this model
        wp = jnp.pad(wp, ((0, Kp - K), (0, Np - N)))
    bp = b
    if Np != N:                       # never triggers for this model
        bp = jnp.pad(bp, ((0, 0), (0, Np - N)))

    gm, gn, gk = Mp // tm, Np // tn, Kp // tk
    vmem_limit = cfg["vmem_limit"]

    if gk == 1:
        out = pl.pallas_call(
            functools.partial(_matmul_bias_act_1k_kernel, act=act),
            out_shape=jax.ShapeDtypeStruct((Mp, Np), out_dtype),
            grid_spec=pltpu.PrefetchScalarGridSpec(
                num_scalar_prefetch=0,
                grid=(gm, gn),
                in_specs=[
                    pl.BlockSpec((tm, Kp), lambda i, j: (i, 0)),
                    pl.BlockSpec((Kp, tn), lambda i, j: (0, j)),
                    pl.BlockSpec((1, tn), lambda i, j: (0, j)),
                ],
                out_specs=pl.BlockSpec((tm, tn), lambda i, j: (i, j)),
            ),
            compiler_params=pltpu.CompilerParams(
                dimension_semantics=("parallel", "parallel"),
                vmem_limit_bytes=vmem_limit,
            ),
        )(xp, wp, bp)
    else:
        out = pl.pallas_call(
            functools.partial(_matmul_bias_act_kernel, act=act),
            out_shape=jax.ShapeDtypeStruct((Mp, Np), out_dtype),
            grid_spec=pltpu.PrefetchScalarGridSpec(
                num_scalar_prefetch=0,
                grid=(gm, gn, gk),
                in_specs=[
                    pl.BlockSpec((tm, tk), lambda i, j, k: (i, k)),
                    pl.BlockSpec((tk, tn), lambda i, j, k: (k, j)),
                    pl.BlockSpec((1, tn), lambda i, j, k: (0, j)),
                ],
                out_specs=pl.BlockSpec((tm, tn), lambda i, j, k: (i, j)),
                scratch_shapes=[pltpu.VMEM((tm, tn), jnp.float32)],
            ),
            compiler_params=pltpu.CompilerParams(
                dimension_semantics=("parallel", "parallel", "arbitrary"),
                vmem_limit_bytes=vmem_limit,
            ),
        )(xp, wp, bp)

    if (Mp, Np) != (M, N):
        out = out[:M, :N]
    return out


def reparameterize(lm, eps, L=LATENT_SIZE):
    """lm: (M, 2L) f32 = [log_var | mean]; eps: (M, L) f32 -> z (M, L) bf16."""
    M = lm.shape[0]
    return pl.pallas_call(
        functools.partial(_reparam_kernel, L=L),
        out_shape=jax.ShapeDtypeStruct((M, L), jnp.bfloat16),
        grid_spec=pltpu.PrefetchScalarGridSpec(
            num_scalar_prefetch=0,
            grid=(1,),
            in_specs=[
                pl.BlockSpec((M, 2 * L), lambda i: (0, 0)),
                pl.BlockSpec((M, L), lambda i: (0, 0)),
            ],
            out_specs=pl.BlockSpec((M, L), lambda i: (0, 0)),
        ),
        compiler_params=pltpu.CompilerParams(
            dimension_semantics=("arbitrary",),
            vmem_limit_bytes=_tpu_cfg()["vmem_limit"],
        ),
    )(lm, eps.astype(jnp.float32))


# ------------------------------ JAX glue ops --------------------------------
# TODO(synk): fuse im2col into the matmul kernel (memory_space=pl.ANY + manual
# DMA) so the patch matrices never round-trip through HBM.


def im2col(x, k, stride):
    """x: (B, H, W, C) NHWC -> patches (B*Ho*Wo, C*k*k), cols ordered (C, kh, kw)."""
    B, H, W, C = x.shape
    Ho = (H - k) // stride + 1
    Wo = (W - k) // stride + 1
    cols = []
    for i in range(k):
        for j in range(k):
            cols.append(x[:, i:i + stride * Ho:stride, j:j + stride * Wo:stride, :])
    p = jnp.stack(cols, axis=-1)                 # (B, Ho, Wo, C, k*k)
    return p.reshape(B * Ho * Wo, C * k * k), Ho, Wo


def conv2d_nhwc(x, w, b, ksz, stride, act, out_dtype=jnp.bfloat16):
    """PyTorch Conv2d(Cin, Cout, ksz, stride), no padding; NHWC in/out."""
    B = x.shape[0]
    patches, Ho, Wo = im2col(x, ksz, stride)
    out = matmul_bias_act(patches, w, b, act=act, out_dtype=out_dtype)
    return out.reshape(B, Ho, Wo, -1)


def conv_transpose2d_nhwc(x, w, b, kp, stride, cout, act, out_dtype=jnp.bfloat16):
    """PyTorch ConvTranspose2d(Cin, Cout, k, stride), no padding; NHWC in/out.

    Sub-pixel decomposition: one stride-1 conv of kernel kp = k/stride over the
    (kp-1)-padded UNdilated input; the stride^2 output phases are packed along
    N in the (pre-built) weight and interleaved afterwards.
    """
    B, H, W, _ = x.shape
    pad = kp - 1
    xpad = jnp.pad(x, ((0, 0), (pad, pad), (pad, pad), (0, 0)))
    patches, Hp, Wp = im2col(xpad, kp, 1)
    out = matmul_bias_act(patches, w, b, act=act, out_dtype=out_dtype)
    # columns ordered (phase_r, phase_c, cout)
    out = out.reshape(B, Hp, Wp, stride, stride, cout)
    out = out.transpose(0, 1, 3, 2, 4, 5)        # (B, Hp, r, Wp, c, cout)
    return out.reshape(B, Hp * stride, Wp * stride, cout)


# ---------------------------- parameters / model ----------------------------


def _prep_conv_weight(w_oihw, b):
    """(Cout, Cin, k, k) PyTorch weight -> (Cin*k*k, Cout) bf16, bias (1, Cout) f32."""
    cout = w_oihw.shape[0]
    wf = w_oihw.reshape(cout, -1).T.astype(jnp.bfloat16)
    return wf, b.reshape(1, -1).astype(jnp.float32)


def _prep_convt_weight(w_iohw, b, stride):
    """(Cin, Cout, k, k) ConvT weight -> sub-pixel packed (Cin*kp*kp, s*s*Cout)."""
    cin, cout, ksz, _ = w_iohw.shape
    kp = ksz // stride
    assert kp * stride == ksz
    cols = []
    for r in range(stride):
        for c in range(stride):
            # phase (r, c) is a stride-1 conv with the flipped (r::s, c::s) sub-kernel
            sub = jnp.flip(w_iohw[:, :, r::stride, c::stride], axis=(-2, -1))
            sub = sub.transpose(1, 0, 2, 3).reshape(cout, cin * kp * kp)
            cols.append(sub.T)                              # (Cin*kp*kp, Cout)
    wf = jnp.concatenate(cols, axis=1).astype(jnp.bfloat16)
    bf = jnp.tile(b, stride * stride).reshape(1, -1).astype(jnp.float32)
    return wf, bf


def _prep_linear(w_out_in, b):
    return (w_out_in.T.astype(jnp.bfloat16),                # (in, out)
            b.reshape(1, -1).astype(jnp.float32))


def init_params(key):
    """Inference-ready params: only jnp arrays (no static metadata -> jit-safe)."""
    keys = jax.random.split(key, 14)

    def uniform(k, shape, fan):
        s = 1.0 / math.sqrt(fan)
        return jax.random.uniform(k, shape, jnp.float32, -s, s)

    params = {"enc_convs": [], "dec_convs": []}
    for i, (cin, cout, ksz, _stride) in enumerate(ENC_CONV_CFG):
        kw, kb = jax.random.split(keys[i])
        fan = cin * ksz * ksz
        w = uniform(kw, (cout, cin, ksz, ksz), fan)
        b = uniform(kb, (cout,), fan)
        wf, bf = _prep_conv_weight(w, b)
        params["enc_convs"].append({"w": wf, "b": bf})

    def lin(k, out_f, in_f):
        kw, kb = jax.random.split(k)
        return _prep_linear(uniform(kw, (out_f, in_f), in_f),
                            uniform(kb, (out_f,), in_f))

    w, b = lin(keys[4], HIDDEN_SIZE, 256 * 6 * 6)
    params["fc1"] = {"w": w, "b": b}
    w, b = lin(keys[5], HIDDEN_SIZE, HIDDEN_SIZE)
    params["fc2"] = {"w": w, "b": b}
    wl, bl = lin(keys[6], LATENT_SIZE, HIDDEN_SIZE)          # encoder_logvar
    wm, bm = lin(keys[7], LATENT_SIZE, HIDDEN_SIZE)          # encoder_mean
    params["latent"] = {"w": jnp.concatenate([wl, wm], axis=1),   # (H, 2L)
                        "b": jnp.concatenate([bl, bm], axis=1)}   # [logvar | mean]
    w, b = lin(keys[8], HIDDEN_SIZE, LATENT_SIZE)
    params["fc4"] = {"w": w, "b": b}
    w, b = lin(keys[9], 256 * 6 * 6, HIDDEN_SIZE)
    params["fc5"] = {"w": w, "b": b}

    for i, (cin, cout, ksz, stride) in enumerate(DEC_CONVT_CFG):
        kw, kb = jax.random.split(keys[10 + i])
        fan = cout * ksz * ksz
        w = uniform(kw, (cin, cout, ksz, ksz), fan)
        b = uniform(kb, (cout,), fan)
        wf, bf = _prep_convt_weight(w, b, stride)
        params["dec_convs"].append({"w": wf, "b": bf})
    return params


def vae_forward(params, x, eps):
    """x: (B, 1, 126, 126) f32 NCHW. Returns (recon (B,1,128,128), mean, log_var)."""
    B = x.shape[0]

    # ----- encoder: 4x [Conv2d(k=4, s=2) + LeakyReLU(0.2)] -----
    h = x.transpose(0, 2, 3, 1).astype(jnp.bfloat16)         # NCHW -> NHWC
    for (_cin, _cout, ksz, stride), p in zip(ENC_CONV_CFG, params["enc_convs"]):
        h = conv2d_nhwc(h, p["w"], p["b"], ksz, stride, act="leaky_relu")
    # Flatten in torch's (C, H, W) order
    h = h.transpose(0, 3, 1, 2).reshape(B, -1)               # (B, 9216)

    # ----- FC bottleneck: carry a single sublane-aligned M padding through -----
    Mp = _round_up(B, 8)
    if Mp != B:
        h = jnp.pad(h, ((0, Mp - B), (0, 0)))
        eps_p = jnp.pad(eps.astype(jnp.float32), ((0, Mp - B), (0, 0)))
    else:
        eps_p = eps.astype(jnp.float32)

    h = matmul_bias_act(h, params["fc1"]["w"], params["fc1"]["b"])
    h = matmul_bias_act(h, params["fc2"]["w"], params["fc2"]["b"])

    # [logvar | mean] matmul with 2 N-blocks (megacore-friendly on v7x),
    # then a tiny VPU reparameterization kernel.
    lm = matmul_bias_act(h, params["latent"]["w"], params["latent"]["b"],
                         out_dtype=jnp.float32, tn_cap=512)
    log_var = lm[:B, :LATENT_SIZE]
    mean = lm[:B, LATENT_SIZE:]
    z = reparameterize(lm, eps_p)                            # (Mp, L) bf16

    h = matmul_bias_act(z, params["fc4"]["w"], params["fc4"]["b"])
    h = matmul_bias_act(h, params["fc5"]["w"], params["fc5"]["b"])
    h = h[:B].reshape(B, 256, 6, 6).transpose(0, 2, 3, 1)    # UnFlatten -> NHWC

    # ----- decoder: 3x [ConvT(k=4, s=2) + ReLU], ConvT(k=6, s=2) + Sigmoid -----
    for (_cin, cout, ksz, stride), p, act in zip(DEC_CONVT_CFG,
                                                 params["dec_convs"], DEC_ACTS):
        out_dt = jnp.float32 if act == "sigmoid" else jnp.bfloat16
        h = conv_transpose2d_nhwc(h, p["w"], p["b"], ksz // stride, stride,
                                  cout, act, out_dtype=out_dt)

    recon = h.transpose(0, 3, 1, 2)                          # NHWC -> NCHW
    return recon, mean, log_var


# ------------------------------- self tests ---------------------------------


def _assert_close(got, ref, name, rel=1e-2):
    got = jnp.asarray(got, jnp.float32)
    ref = jnp.asarray(ref, jnp.float32)
    err = float(jnp.max(jnp.abs(got - ref)))
    scale = float(jnp.max(jnp.abs(ref))) + 1e-6
    if not (err <= rel * scale):
        raise AssertionError(f"{name}: max|err|={err:.3e} vs scale={scale:.3e}")


def _bf16_exact(x):
    return x.astype(jnp.bfloat16).astype(jnp.float32)


def _self_test(key):
    """Numeric checks of the conv / sub-pixel convT lowering and the matmul."""
    ks = jax.random.split(key, 12)

    # --- Conv2d (k=4, s=2) vs lax.conv_general_dilated ---
    cin, cout, ksz, s = 3, 8, 4, 2
    x = _bf16_exact(jax.random.normal(ks[0], (2, 11, 11, cin), jnp.float32))
    w = _bf16_exact(jax.random.normal(ks[1], (cout, cin, ksz, ksz), jnp.float32))
    b = _bf16_exact(jax.random.normal(ks[2], (cout,), jnp.float32))
    wf, bf = _prep_conv_weight(w, b)
    got = conv2d_nhwc(x.astype(jnp.bfloat16), wf, bf, ksz, s,
                      act="none", out_dtype=jnp.float32)
    ref = jax.lax.conv_general_dilated(
        x, jnp.transpose(w, (2, 3, 1, 0)), (s, s), "VALID",
        dimension_numbers=("NHWC", "HWIO", "NHWC")) + b.reshape(1, 1, 1, -1)
    _assert_close(got, ref, "conv2d")

    # --- ConvTranspose2d (k=4,s=2) and (k=6,s=2) vs lax reference ---
    for i, (tcin, tcout, tk, ts, hw) in enumerate(
            [(8, 5, 4, 2, 5), (6, 1, 6, 2, 7)]):
        x = _bf16_exact(jax.random.normal(ks[3 + 3 * i], (2, hw, hw, tcin), jnp.float32))
        w = _bf16_exact(jax.random.normal(ks[4 + 3 * i], (tcin, tcout, tk, tk), jnp.float32))
        b = _bf16_exact(jax.random.normal(ks[5 + 3 * i], (tcout,), jnp.float32))
        wf, bf = _prep_convt_weight(w, b, ts)
        got = conv_transpose2d_nhwc(x.astype(jnp.bfloat16), wf, bf, tk // ts,
                                    ts, tcout, act="none", out_dtype=jnp.float32)
        kern = jnp.transpose(jnp.flip(w, axis=(-2, -1)), (2, 3, 0, 1))  # HWIO
        ref = jax.lax.conv_general_dilated(
            x, kern, (1, 1), [(tk - 1, tk - 1)] * 2, lhs_dilation=(ts, ts),
            dimension_numbers=("NHWC", "HWIO", "NHWC")) + b.reshape(1, 1, 1, -1)
        _assert_close(got, ref, f"conv_transpose2d_k{tk}")

    # --- K-accumulating matmul path (gk > 1, gn > 1) ---
    x = _bf16_exact(jax.random.normal(ks[9], (16, 512), jnp.float32))
    w = _bf16_exact(jax.random.normal(ks[10], (512, 256), jnp.float32))
    b = _bf16_exact(jax.random.normal(ks[11], (256,), jnp.float32))
    got = matmul_bias_act(x.astype(jnp.bfloat16), w.astype(jnp.bfloat16),
                          b.reshape(1, -1), act="none", out_dtype=jnp.float32,
                          tn_cap=128, tk_cap=128)
    _assert_close(got, x @ w + b, "matmul_acc")


# ----------------------------------- main -----------------------------------

if __name__ == "__main__":
    key = jax.random.PRNGKey(0)
    kparam, kx, keps, ktest = jax.random.split(key, 4)

    _self_test(ktest)

    params = init_params(kparam)
    # Input spatial size 126 is fixed by the architecture (fc1 = Linear(9216, 4096)).
    # TODO(synk): larger batch (M=128-256) is by far the biggest throughput
    # lever (weight streaming is reused); kept B=2 for the smoke test.
    x = jax.random.normal(kx, (2, 1, 126, 126), dtype=jnp.float32)
    eps = jax.random.normal(keps, (2, LATENT_SIZE), dtype=jnp.float32)

    recon, mean, log_var = jax.jit(vae_forward)(params, x, eps)
    jax.block_until_ready((recon, mean, log_var))

    assert recon.shape == (2, 1, 128, 128), recon.shape
    assert mean.shape == (2, LATENT_SIZE), mean.shape
    assert log_var.shape == (2, LATENT_SIZE), log_var.shape
    assert bool(jnp.all(jnp.isfinite(recon)))
    assert bool(jnp.all(jnp.isfinite(mean)))
    assert bool(jnp.all(jnp.isfinite(log_var)))
    assert bool(jnp.all((recon >= 0.0) & (recon <= 1.0)))  # sigmoid output

    print("KERNEL_OK")
</pallas_src>

<mosaic_0001>
module attributes {stable_mosaic.version = 11 : i64} {
  func.func @_matmul_bias_act_1k_kernel(%arg0: i32, %arg1: i32, %arg2: memref<32x48xbf16, #tpu.memory_space<vmem>>, %arg3: memref<48x8xbf16, #tpu.memory_space<vmem>>, %arg4: memref<1x8xf32, #tpu.memory_space<vmem>>, %arg5: memref<32x8xf32, #tpu.memory_space<vmem>>) attributes {dimension_semantics = [#tpu.dimension_semantics<parallel>, #tpu.dimension_semantics<parallel>], iteration_bounds = array<i64: 1, 1>, scalar_prefetch = 0 : i64, scratch_operands = 0 : i64, tpu.core_type = #tpu.core_type<tc>, window_params = [{transform_indices = @transform_0, window_bounds = array<i64: 32, 48>}, {transform_indices = @transform_1, window_bounds = array<i64: 48, 8>}, {transform_indices = @transform_2, window_bounds = array<i64: 1, 8>}, {transform_indices = @transform_3, window_bounds = array<i64: 32, 8>}]} {
    %c0 = arith.constant 0 : index
    %c0_0 = arith.constant 0 : index
    %0 = vector.load %arg2[%c0, %c0_0] : memref<32x48xbf16, #tpu.memory_space<vmem>>, vector<32x48xbf16>
    %c0_1 = arith.constant 0 : index
    %c0_2 = arith.constant 0 : index
    %1 = vector.load %arg3[%c0_1, %c0_2] : memref<48x8xbf16, #tpu.memory_space<vmem>>, vector<48x8xbf16>
    %cst = arith.constant dense<0.000000e+00> : vector<32x8xf32>
    %2 = tpu.matmul %0, %1, %cst {dimension_numbers = #tpu.dot_dimension_numbers<[1], [0], [0], [1], [0, 0, 1, 1], [], []>} : vector<32x48xbf16>, vector<48x8xbf16>, vector<32x8xf32> -> vector<32x8xf32>
    %c0_3 = arith.constant 0 : index
    %c0_4 = arith.constant 0 : index
    %3 = vector.load %arg4[%c0_3, %c0_4] : memref<1x8xf32, #tpu.memory_space<vmem>>, vector<1x8xf32>
    %4 = vector.broadcast %3 : vector<1x8xf32> to vector<32x8xf32>
    %5 = arith.addf %2, %4 : vector<32x8xf32>
    %c0_5 = arith.constant 0 : index
    %c0_6 = arith.constant 0 : index
    %6 = vector.load %arg5[%c0_5, %c0_6] : memref<32x8xf32, #tpu.memory_space<vmem>>, vector<32x8xf32>
    tpu.vector_store %arg5[%c0_5, %c0_6], %5 {strides = array<i32>} : memref<32x8xf32, #tpu.memory_space<vmem>>, vector<32x8xf32>,
    return
  }
  func.func @transform_0(%arg0: i32, %arg1: i32) -> (i32, i32) {
    %c0_i32 = arith.constant 0 : i32
    %c0_i32_0 = arith.constant 0 : i32
    return %arg0, %c0_i32 : i32, i32
  }
  func.func @transform_1(%arg0: i32, %arg1: i32) -> (i32, i32) {
    %c0_i32 = arith.constant 0 : i32
    %c0_i32_0 = arith.constant 0 : i32
    return %c0_i32, %arg1 : i32, i32
  }
  func.func @transform_2(%arg0: i32, %arg1: i32) -> (i32, i32) {
    %c0_i32 = arith.constant 0 : i32
    %c0_i32_0 = arith.constant 0 : i32
    return %c0_i32, %arg1 : i32, i32
  }
  func.func @transform_3(%arg0: i32, %arg1: i32) -> (i32, i32) {
    %c0_i32 = arith.constant 0 : i32
    return %arg0, %arg1 : i32, i32
  }
}

</mosaic_0001>

<llo_original>
// kernel: tpu_custom_call.1
$region0: #{tpu_custom_call.1}
  #allocation0 [shape = 'u32[]', space=smem, size = 0x4, offset = 0x4, fixed_abs, tag = 'smem constant byte address 0x4 - core index']
  #allocation1 [shape = 'u32[144,128]{1,0:T(1,128)}', space=vmem, size = 0x12000, scoped, tag = 'internal scratch']
  %s0 = inlined_call_operand.vmem [shape: bf16[32,48], index: 0, kind: input, shape index: {}]
  %s1 = inlined_call_operand.vmem [shape: bf16[48,8], index: 1, kind: input, shape index: {}]
  %s2 = inlined_call_operand.vmem [shape: f32[1,8], index: 2, kind: input, shape index: {}]
  %s3 = inlined_call_operand.vmem [shape: f32[32,8], index: 3, kind: output, shape index: {}]
  %s4 = sld [smem:[#allocation0]]
  $region22: #{tpu_custom_call.1} parent=0
    _
  %s6 = ssub.s32 1, %s4
  %s7 = scalar_select 0, %s6, %s4
  // Predicated region
  $region2: #{tpu_custom_call.1} parent=0 // pred_check
    _
  $region3: #{tpu_custom_call.1} parent=0 // pred_check_branch
    %9 = sbr.rel (0) target = $region5
  $region4: #{tpu_custom_call.1} parent=0 // pred_region
    _
  $region5: #{tpu_custom_call.1} parent=0 // pred_fallthru
    _
  // Predicated region
  $region6: #{tpu_custom_call.1} parent=0 // pred_check
    _
  $region7: #{tpu_custom_call.1} parent=0 // pred_check_branch
    %11 = sbr.rel (0) target = $region9
  $region8: #{tpu_custom_call.1} parent=0 // pred_region
    _
  $region9: #{tpu_custom_call.1} parent=0 // pred_fallthru
    _
  // Predicated region
  $region10: #{tpu_custom_call.1} parent=0 // pred_check
    _
  $region11: #{tpu_custom_call.1} parent=0 // pred_check_branch
    %13 = sbr.rel (0) target = $region13
  $region12: #{tpu_custom_call.1} parent=0 // pred_region
    _
  $region13: #{tpu_custom_call.1} parent=0 // pred_fallthru
    _
  %v15 = vld [vmem:[%s0] sm:$0xf]
  %v16 = vld [vmem:[%s0 + $0x4] sm:$0xf]
  %v17 = vld [vmem:[%s0 + $0x8] sm:$0xf]
  %v18 = vld [vmem:[%s0 + $0xc] sm:$0xf]
  %v19 = vld [vmem:[%s1] sm:$0xf]
  %v20 = vld [vmem:[%s1 + $0x4] sm:$0xf]
  %v21 = vld [vmem:[%s1 + $0x8] sm:$0xf]
  %v22 = vld [vmem:[%s1 + $0xc] sm:$0xf]
  %v23 = vld [vmem:[%s1 + $0x10] sm:$0xf]
  %v24 = vld [vmem:[%s1 + $0x14] sm:$0xf]
  %v25 = vld [vmem:[%s2] sm:$0x1]
  %v27 = vlaneseq
  %v28 = vshrl.u32 %v27, 7
  %v29 = vsub.s32 0, %v28
  %v30 = vrot.slane %v25, %v29
  %v36 = vunpack.c.l.b16 %v15
  %v37 = vunpack.c.l.b16 %v16
  %v38 = vunpack.c.l.b16 %v17
  %v39 = vunpack.c.l.b16 %v18
  %v40 = vpack.c.b16 %v37, %v36
  %v41 = vpack.c.b16 %v39, %v38
  %v48 = vunpack.c.l.b16 %v19
  %v49 = vunpack.c.l.b16 %v20
  %v50 = vunpack.c.l.b16 %v21
  %v51 = vunpack.c.l.b16 %v22
  %v52 = vunpack.c.l.b16 %v23
  %v53 = vunpack.c.l.b16 %v24
  %v54 = vpack.c.b16 %v49, %v48
  %v55 = vpack.c.b16 %v51, %v50
  %v56 = vpack.c.b16 %v53, %v52
  %vm60 = vcmask 392192
  %v62 = vsel %vm60, %v40, 0
  %v65 = vsel %vm60, %v41, 0
  %67 = vmatprep.subr.bf16.mxu0 0
  %68 = vmatpush1.bf16.msra.mxu0 %v54
  %69 = vmatprep.subr.bf16.mxu0 0
  %70 = vmatpush1.bf16.msra.mxu0 %v55
  %71 = vmatprep.subr.bf16.mxu0 0
  %72 = vmatpush1.bf16.msra.mxu0 %v56
  %73 = vmatprep.subr.bf16.mxu0 0
  %74 = vmatpush1.bf16.msra.mxu0 0
  %75 = vmatprep.subr.bf16.mxu0 0
  %76 = vmatpush1.bf16.msra.mxu0 0
  %77 = vmatprep.subr.bf16.mxu0 0
  %78 = vmatpush1.bf16.msra.mxu0 0
  %79 = vmatprep.subr.bf16.mxu0 0
  %80 = vmatpush1.bf16.msra.mxu0 0
  %81 = vmatprep.subr.bf16.mxu0 0
  %82 = vmatpush1.bf16.msra.mxu0 0
  %83 = vmatprep.subr.bf16.mxu0 0
  %84 = vmatpush1.bf16.msra.mxu0 0
  %85 = vmatprep.subr.bf16.mxu0 0
  %86 = vmatpush1.bf16.msra.mxu0 0
  %87 = vmatprep.subr.bf16.mxu0 0
  %88 = vmatpush1.bf16.msra.mxu0 0
  %89 = vmatprep.subr.bf16.mxu0 0
  %90 = vmatpush1.bf16.msra.mxu0 0
  %91 = vmatprep.subr.bf16.mxu0 0
  %92 = vmatpush1.bf16.msra.mxu0 0
  %93 = vmatprep.subr.bf16.mxu0 0
  %94 = vmatpush1.bf16.msra.mxu0 0
  %95 = vmatprep.subr.bf16.mxu0 0
  %96 = vmatpush1.bf16.msra.mxu0 0
  %97 = vmatprep.subr.bf16.mxu0 0
  %98 = vmatpush1.bf16.msra.mxu0 0
  %99 = vmatprep.mubr.bf16.mxu0 0
  %100 = vmatmul.mubr.bf16.gmra.mrb[0].mxu0 %v62
  %v101 = vpop.f32.mrb[0].mxu0
  %v102 = vadd.f32 %v30, %v101
  %v103 = vpop.f32.mrb[0].mxu0
  %v104 = vpop.f32.mrb[0].mxu0
  %v105 = vadd.f32 %v30, %v104
  %v106 = vpop.f32.mrb[0].mxu0
  %107 = vmatprep.mubr.bf16.mxu0 0
  %108 = vmatmul.mubr.bf16.gmra.mrb[0].mxu0 %v65
  %v109 = vpop.f32.mrb[0].mxu0
  %v110 = vadd.f32 %v30, %v109
  %v111 = vpop.f32.mrb[0].mxu0
  %v112 = vpop.f32.mrb[0].mxu0
  %v113 = vadd.f32 %v30, %v112
  %v114 = vpop.f32.mrb[0].mxu0
  %115 = vdwg.mxu0
  %vm116 = vcmask 64512
  %117 = vst.msk [vmem:[%s3] sm:$0xff] %vm116, %v102
  %118 = vst.msk [vmem:[%s3 + $0x8] sm:$0xff] %vm116, %v105
  %119 = vst.msk [vmem:[%s3 + $0x10] sm:$0xff] %vm116, %v110
  %120 = vst.msk [vmem:[%s3 + $0x18] sm:$0xff] %vm116, %v113
  // Predicated region
  $region14: #{tpu_custom_call.1} parent=0 // pred_check
    _
  $region15: #{tpu_custom_call.1} parent=0 // pred_check_branch
    %122 = sbr.rel (0) target = $region17
  $region16: #{tpu_custom_call.1} parent=0 // pred_region
    _
  $region17: #{tpu_custom_call.1} parent=0 // pred_fallthru
    _
  // Predicated region
  $region18: #{tpu_custom_call.1} parent=0 // pred_check
    _
  $region19: #{tpu_custom_call.1} parent=0 // pred_check_branch
    %124 = sbr.rel (0) target = $region21
  $region20: #{tpu_custom_call.1} parent=0 // pred_region
    _
  $region21: #{tpu_custom_call.1} parent=0 // pred_fallthru
    _

</llo_original>
